<compile_context>
chip_gen: v7x
topology: tpu7x:2x2x1
jax: 0.10.0
libtpu: 0.0.40
codegen_flags: <defaults>
</compile_context>

<pallas_src>
import functools

import jax
import jax.numpy as jnp
from jax.experimental import pallas as pl
from jax.experimental.pallas import tpu as pltpu


def _round_up(x, m):
    return (x + m - 1) // m * m


def _kldiv_kernel(x_ref, t_ref, acc_ref, *, total_rows, block_rows,
                  tiles_per_part, num_classes):
    """One row tile: log_softmax over classes + KL pointwise term, folded into a
    vreg-shaped (8,128) output-resident accumulator.

    KL pointwise (PyTorch, log_target=False):  xlogy(t, t) - t * logprob
    batchmean reduction (sum / batch) is finished in the wrapper.
    """
    p = pl.program_id(0)    # part (TensorCore) axis: "parallel"
    it = pl.program_id(1)   # row-tile axis within a part: "arbitrary" (reduction)

    @pl.when(it == 0)
    def _():
        acc_ref[...] = jnp.zeros_like(acc_ref)

    x = x_ref[...].astype(jnp.float32)
    t = t_ref[...].astype(jnp.float32)

    # Numerically stable log_softmax along the class (lane) axis.
    m = jnp.max(x, axis=-1, keepdims=True)
    lse = jnp.log(jnp.sum(jnp.exp(x - m), axis=-1, keepdims=True)) + m
    logp = x - lse

    # Mask rows past the true batch (ragged last tile / padded edge block).
    tile_idx = p * tiles_per_part + it
    row_in_block = jax.lax.broadcasted_iota(jnp.int32, (block_rows, num_classes), 0)
    global_row = tile_idx * block_rows + row_in_block
    valid = (global_row < total_rows) & (t > 0.0)

    # Fused pointwise term: where t==0 (or row is padding) the contribution is exactly 0.
    safe_t = jnp.where(valid, t, 1.0)
    pointwise = jnp.where(valid, t * (jnp.log(safe_t) - logp), 0.0)

    if num_classes % 128 == 0:
        # Fold lane groups, then sublane groups, into the (8,128) accumulator
        # with elementwise VPU adds; no per-step cross-lane reduction.
        pw = pointwise.reshape(block_rows, num_classes // 128, 128).sum(axis=1)
        acc_ref[...] += pw.reshape(block_rows // 8, 8, 128).sum(axis=0)
    else:
        # Narrow / unaligned class dim: scalar partial sum dropped into acc[0, 0].
        s = jnp.sum(pointwise)
        r = jax.lax.broadcasted_iota(jnp.int32, (8, 128), 0)
        c = jax.lax.broadcasted_iota(jnp.int32, (8, 128), 1)
        acc_ref[...] += jnp.where((r == 0) & (c == 0), s, 0.0)


def kldiv_batchmean(x, target, *, block_rows=None):
    """x: (B, C) raw logits; target: (B, C) probabilities. Returns scalar f32 loss."""
    assert x.shape == target.shape and x.ndim == 2
    B, C = x.shape
    itemsize = jnp.dtype(x.dtype).itemsize

    # TODO(synk): for vocab-scale C (e.g. 32K+), add class-dim tiling with an online
    # logsumexp carry instead of keeping the full class axis in one block.
    if block_rows is None:
        # ~1 MiB per input block per pipeline buffer (2 inputs x 2 buffers => ~4 MiB of DMA
        # buffers), which comfortably fits the scoped-VMEM defaults on v5e/v6e/v7x.
        target_bytes = 1 << 20
        block_rows = max(8, (target_bytes // max(1, C * itemsize)) // 8 * 8)
    block_rows = max(8, _round_up(block_rows, 8))
    block_rows = min(block_rows, _round_up(B, 8))

    n_tiles = -(-B // block_rows)
    # Split row tiles across the 2 TensorCores (v7x megacore) when it divides evenly;
    # on 1-TC chips the leading axis is just a serial loop of length 1 or 2.
    num_parts = 2 if (n_tiles % 2 == 0 and n_tiles >= 2) else 1
    tiles_per_part = n_tiles // num_parts

    kernel = functools.partial(
        _kldiv_kernel,
        total_rows=B,
        block_rows=block_rows,
        tiles_per_part=tiles_per_part,
        num_classes=C,
    )

    def row_map(p, i):
        return (p * tiles_per_part + i, 0)

    # Per-part (8,128) partial-sum slabs; output block index depends only on the parallel
    # axis, so it stays resident (accumulator) across the "arbitrary" row-tile axis.
    partials = pl.pallas_call(
        kernel,
        out_shape=jax.ShapeDtypeStruct((num_parts * 8, 128), jnp.float32),
        grid_spec=pltpu.PrefetchScalarGridSpec(
            num_scalar_prefetch=0,
            grid=(num_parts, tiles_per_part),
            in_specs=[
                pl.BlockSpec((block_rows, C), row_map),
                pl.BlockSpec((block_rows, C), row_map),
            ],
            out_specs=pl.BlockSpec((8, 128), lambda p, i: (p, 0)),
        ),
        compiler_params=pltpu.CompilerParams(
            dimension_semantics=("parallel", "arbitrary"),
            vmem_limit_bytes=32 * 1024 * 1024,
        ),
    )(x, target)

    # Single deferred cross-lane/sublane reduce + batchmean division.
    return jnp.sum(partials) / jnp.float32(B)


def kldiv_batchmean_ref(x, target):
    """Pure-JAX reference of the PyTorch module's forward."""
    logp = jax.nn.log_softmax(x.astype(jnp.float32), axis=-1)
    t = target.astype(jnp.float32)
    safe_t = jnp.where(t > 0, t, 1.0)
    pointwise = jnp.where(t > 0, t * jnp.log(safe_t), 0.0) - t * logp
    return jnp.sum(pointwise) / x.shape[0]


if __name__ == "__main__":
    key = jax.random.PRNGKey(0)
    kx, kt, kx2, kt2 = jax.random.split(key, 4)

    # Small shape consistent with the module: (batch, num_classes).
    B, C = 16, 128
    x = jax.random.normal(kx, (B, C), dtype=jnp.float32)
    target = jax.nn.softmax(jax.random.normal(kt, (B, C), dtype=jnp.float32), axis=-1)

    loss = kldiv_batchmean(x, target)
    jax.block_until_ready(loss)
    ref = kldiv_batchmean_ref(x, target)
    assert jnp.allclose(loss, ref, rtol=1e-5, atol=1e-6), (loss, ref)

    # Ragged batch + forced small tile: exercises the row mask and the 2-part grid.
    B2 = 24
    x2 = jax.random.normal(kx2, (B2, C), dtype=jnp.float32)
    t2 = jax.nn.softmax(jax.random.normal(kt2, (B2, C), dtype=jnp.float32), axis=-1)
    loss2 = kldiv_batchmean(x2, t2, block_rows=16)
    jax.block_until_ready(loss2)
    ref2 = kldiv_batchmean_ref(x2, t2)
    assert jnp.allclose(loss2, ref2, rtol=1e-5, atol=1e-6), (loss2, ref2)

    print("KERNEL_OK")
</pallas_src>

<mosaic_0001>
module attributes {stable_mosaic.version = 11 : i64} {
  func.func @_kldiv_kernel(%arg0: i32, %arg1: i32, %arg2: memref<16x128xf32, #tpu.memory_space<vmem>>, %arg3: memref<16x128xf32, #tpu.memory_space<vmem>>, %arg4: memref<8x128xf32, #tpu.memory_space<vmem>>) attributes {dimension_semantics = [#tpu.dimension_semantics<parallel>, #tpu.dimension_semantics<arbitrary>], iteration_bounds = array<i64: 1, 1>, scalar_prefetch = 0 : i64, scratch_operands = 0 : i64, tpu.core_type = #tpu.core_type<tc>, window_params = [{transform_indices = @transform_0, window_bounds = array<i64: 16, 128>}, {transform_indices = @transform_1, window_bounds = array<i64: 16, 128>}, {transform_indices = @transform_2, window_bounds = array<i64: 8, 128>}]} {
    %c0_i32 = arith.constant 0 : i32
    %0 = arith.cmpi eq, %arg1, %c0_i32 : i32
    %1 = arith.extui %0 : i1 to i32
    %c0_i32_0 = arith.constant 0 : i32
    %2 = arith.cmpi ne, %1, %c0_i32_0 : i32
    scf.if %2 {
      %cst_15 = arith.constant 0.000000e+00 : f32
      %41 = vector.broadcast %cst_15 : f32 to vector<8x128xf32>
      %c0_16 = arith.constant 0 : index
      %c0_17 = arith.constant 0 : index
      %42 = vector.load %arg4[%c0_16, %c0_17] : memref<8x128xf32, #tpu.memory_space<vmem>>, vector<8x128xf32>
      tpu.vector_store %arg4[%c0_16, %c0_17], %41 {strides = array<i32>} : memref<8x128xf32, #tpu.memory_space<vmem>>, vector<8x128xf32>,
    } else {
    }
    %c0 = arith.constant 0 : index
    %c0_1 = arith.constant 0 : index
    %3 = vector.load %arg2[%c0, %c0_1] : memref<16x128xf32, #tpu.memory_space<vmem>>, vector<16x128xf32>
    %c0_2 = arith.constant 0 : index
    %c0_3 = arith.constant 0 : index
    %4 = vector.load %arg3[%c0_2, %c0_3] : memref<16x128xf32, #tpu.memory_space<vmem>>, vector<16x128xf32>
    %cst = arith.constant dense<0xFF800000> : vector<16xf32>
    %5 = vector.multi_reduction <maximumf>, %3, %cst [1] : vector<16x128xf32> to vector<16xf32>
    %6 = vector.shape_cast %5 : vector<16xf32> to vector<16x1xf32>
    %7 = vector.broadcast %6 : vector<16x1xf32> to vector<16x128xf32>
    %8 = arith.subf %3, %7 : vector<16x128xf32>
    %9 = math.exp %8 : vector<16x128xf32>
    %cst_4 = arith.constant dense<0.000000e+00> : vector<16xf32>
    %10 = vector.multi_reduction <add>, %9, %cst_4 [1] : vector<16x128xf32> to vector<16xf32>
    %11 = vector.shape_cast %10 : vector<16xf32> to vector<16x1xf32>
    %12 = math.log %11 : vector<16x1xf32>
    %13 = arith.addf %12, %6 : vector<16x1xf32>
    %14 = vector.broadcast %13 : vector<16x1xf32> to vector<16x128xf32>
    %15 = arith.subf %3, %14 : vector<16x128xf32>
    %c1_i32 = arith.constant 1 : i32
    %16 = arith.muli %arg0, %c1_i32 : i32
    %17 = arith.addi %16, %arg1 : i32
    %18 = tpu.iota {dimensions = array<i32: 0>} : vector<16x128xi32>
    %c16_i32 = arith.constant 16 : i32
    %19 = arith.muli %17, %c16_i32 : i32
    %20 = vector.broadcast %19 : i32 to vector<16x128xi32>
    %21 = arith.addi %20, %18 : vector<16x128xi32>
    %c16_i32_5 = arith.constant 16 : i32
    %22 = vector.broadcast %c16_i32_5 : i32 to vector<16x128xi32>
    %23 = arith.cmpi slt, %21, %22 : vector<16x128xi32>
    %cst_6 = arith.constant 0.000000e+00 : f32
    %24 = vector.broadcast %cst_6 : f32 to vector<16x128xf32>
    %25 = arith.cmpf ogt, %4, %24 : vector<16x128xf32>
    %26 = arith.andi %23, %25 : vector<16x128xi1>
    %cst_7 = arith.constant 1.000000e+00 : f32
    %27 = vector.broadcast %cst_7 : f32 to vector<16x128xf32>
    %28 = arith.select %26, %4, %27 : vector<16x128xi1>, vector<16x128xf32>
    %29 = math.log %28 : vector<16x128xf32>
    %30 = arith.subf %29, %15 : vector<16x128xf32>
    %31 = arith.mulf %4, %30 : vector<16x128xf32>
    %cst_8 = arith.constant 0.000000e+00 : f32
    %32 = vector.broadcast %cst_8 : f32 to vector<16x128xf32>
    %33 = arith.select %26, %31, %32 : vector<16x128xi1>, vector<16x128xf32>
    %34 = vector.shape_cast %33 : vector<16x128xf32> to vector<16x1x128xf32>
    %cst_9 = arith.constant dense<0.000000e+00> : vector<16x128xf32>
    %35 = vector.multi_reduction <add>, %34, %cst_9 [1] : vector<16x1x128xf32> to vector<16x128xf32>
    %c0_10 = arith.constant 0 : index
    %c0_11 = arith.constant 0 : index
    %36 = vector.load %arg4[%c0_10, %c0_11] : memref<8x128xf32, #tpu.memory_space<vmem>>, vector<8x128xf32>
    %37 = vector.shape_cast %35 : vector<16x128xf32> to vector<2x8x128xf32>
    %cst_12 = arith.constant dense<0.000000e+00> : vector<8x128xf32>
    %38 = vector.multi_reduction <add>, %37, %cst_12 [0] : vector<2x8x128xf32> to vector<8x128xf32>
    %39 = arith.addf %36, %38 : vector<8x128xf32>
    %c0_13 = arith.constant 0 : index
    %c0_14 = arith.constant 0 : index
    %40 = vector.load %arg4[%c0_13, %c0_14] : memref<8x128xf32, #tpu.memory_space<vmem>>, vector<8x128xf32>
    tpu.vector_store %arg4[%c0_13, %c0_14], %39 {strides = array<i32>} : memref<8x128xf32, #tpu.memory_space<vmem>>, vector<8x128xf32>,
    return
  }
  func.func @transform_0(%arg0: i32, %arg1: i32) -> (i32, i32) {
    %c1_i32 = arith.constant 1 : i32
    %0 = arith.muli %arg0, %c1_i32 : i32
    %1 = arith.addi %0, %arg1 : i32
    %c0_i32 = arith.constant 0 : i32
    %c0_i32_0 = arith.constant 0 : i32
    return %1, %c0_i32 : i32, i32
  }
  func.func @transform_1(%arg0: i32, %arg1: i32) -> (i32, i32) {
    %c1_i32 = arith.constant 1 : i32
    %0 = arith.muli %arg0, %c1_i32 : i32
    %1 = arith.addi %0, %arg1 : i32
    %c0_i32 = arith.constant 0 : i32
    %c0_i32_0 = arith.constant 0 : i32
    return %1, %c0_i32 : i32, i32
  }
  func.func @transform_2(%arg0: i32, %arg1: i32) -> (i32, i32) {
    %c0_i32 = arith.constant 0 : i32
    %c0_i32_0 = arith.constant 0 : i32
    return %arg0, %c0_i32 : i32, i32
  }
}

</mosaic_0001>

<llo_original>
// kernel: tpu_custom_call.1
$region0: #{tpu_custom_call.1}
  #allocation0 [shape = 'u32[]', space=smem, size = 0x4, offset = 0x4, fixed_abs, tag = 'smem constant byte address 0x4 - core index']
  #allocation1 [shape = 'u32[144,128]{1,0:T(1,128)}', space=vmem, size = 0x12000, scoped, tag = 'internal scratch']
  %s0 = inlined_call_operand.hbm [shape: f32[16,128], index: 0, kind: input, shape index: {}]
  %s1 = inlined_call_operand.hbm [shape: f32[16,128], index: 1, kind: input, shape index: {}]
  %s2 = inlined_call_operand.hbm [shape: f32[8,128], index: 2, kind: output, shape index: {}]
  %s3 = sld [smem:[#allocation0]]
  $region30: #{tpu_custom_call.1} parent=0
    _
  %s5 = ssub.s32 1, %s3
  %s6 = scalar_select 0, %s5, %s3
  $region1: #{tpu_custom_call.1} parent=0
    #allocation2 [shape = 'u8[8192]{0}', space=vmem, size = 0x2000, scoped, tag = 'input window, operand 0, single buffered']
    #allocation3 [shape = 's32[1]{0}', space=sflag, size = 0x4, scoped, tag = 'scoped memory for tpu_custom_call.1']
    #allocation4 [shape = 's32[1]{0}', space=sflag, size = 0x4, scoped, tag = 'scoped memory for tpu_custom_call.1']
    #allocation5 [shape = 'u8[8192]{0}', space=vmem, size = 0x2000, scoped, tag = 'input window, operand 1, single buffered']
    #allocation6 [shape = 's32[1]{0}', space=sflag, size = 0x4, scoped, tag = 'scoped memory for tpu_custom_call.1']
    #allocation7 [shape = 'u8[4096]{0}', space=vmem, size = 0x1000, scoped, tag = 'output window, operand 0, single buffered']
    %7 = vsyncpa [#allocation3], 0
    %8 = vsyncpa [#allocation6], 0
    %9 = vsyncpa [#allocation4], 0
    // Predicated region
    $region2: #{tpu_custom_call.1} parent=1 // pred_check
      _
    $region3: #{tpu_custom_call.1} parent=1 // pred_check_branch
      %11 = sbr.rel (0) target = $region5
    $region4: #{tpu_custom_call.1} parent=1 // pred_region
      %s12 = sadd.s32 0, 0
      %s13 = smul.u32 2, %s12
      %s15 = ssub.s32 256, 256
      %16 = vsyncadd [#allocation3], %s15
      %s17 = smul.addr %s13, 128
      %s18 = scalar_lea.hbm %s0, %s17
      %s19 = sshll.u32 [#allocation2], 4
      %s20 = int_to_ptr.vmem [resolvable:$true] %s19
      %25 = dma.hbm_to_vmem [thread:$0]  %s18, 256, %s20, [#allocation3], 128, 128, 8
    $region5: #{tpu_custom_call.1} parent=1 // pred_fallthru
      _
    // Predicated region
    $region6: #{tpu_custom_call.1} parent=1 // pred_check
      _
    $region7: #{tpu_custom_call.1} parent=1 // pred_check_branch
      %27 = sbr.rel (0) target = $region9
    $region8: #{tpu_custom_call.1} parent=1 // pred_region
      %s28 = sadd.s32 0, 0
      %s29 = smul.u32 2, %s28
      %s31 = ssub.s32 256, 256
      %32 = vsyncadd [#allocation6], %s31
      %s33 = smul.addr %s29, 128
      %s34 = scalar_lea.hbm %s1, %s33
      %s35 = sshll.u32 [#allocation5], 4
      %s36 = int_to_ptr.vmem [resolvable:$true] %s35
      %41 = dma.hbm_to_vmem [thread:$0]  %s34, 256, %s36, [#allocation6], 128, 128, 8
    $region9: #{tpu_custom_call.1} parent=1 // pred_fallthru
      _
    // Predicated region
    $region10: #{tpu_custom_call.1} parent=1 // pred_check
      _
    $region11: #{tpu_custom_call.1} parent=1 // pred_check_branch
      %43 = sbr.rel (0) target = $region13
    $region12: #{tpu_custom_call.1} parent=1 // pred_region
      %44 = dma.done [#allocation3], 256
    $region13: #{tpu_custom_call.1} parent=1 // pred_fallthru
      _
    // Predicated region
    $region14: #{tpu_custom_call.1} parent=1 // pred_check
      _
    $region15: #{tpu_custom_call.1} parent=1 // pred_check_branch
      %46 = sbr.rel (0) target = $region17
    $region16: #{tpu_custom_call.1} parent=1 // pred_region
      %47 = dma.done [#allocation6], 256
    $region17: #{tpu_custom_call.1} parent=1 // pred_fallthru
      _
    %s48 = sadd.s32 0, 0
    %s49 = smul.u32 2, %s48
    %s50 = sadd.s32 0, 0
    %s51 = smul.u32 2, %s50
    %p52 = scmp.eq.s32.totalorder 0, 0
    // Predicated region
    $region18: #{tpu_custom_call.1} parent=1 // pred_check
      %p53 = pneg %p52
    $region19: #{tpu_custom_call.1} parent=1 // pred_check_branch
      %55 = sbr.rel (%p53) target = $region21
    $region20: #{tpu_custom_call.1} parent=1 // pred_region
      %56 = vst [vmem:[#allocation7] sm:$0xff] 0.0
    $region21: #{tpu_custom_call.1} parent=1 // pred_fallthru
      _
    %v57 = vld [vmem:[#allocation2] sm:$0xff]
    %v58 = vld [vmem:[#allocation2 + $0x8] sm:$0xff]
    %v59 = vld [vmem:[#allocation5] sm:$0xff]
    %v60 = vld [vmem:[#allocation5 + $0x8] sm:$0xff]
    %61 = vmax.xlane.f32.xlu0 %v57
    %v62 = vpop.xlane.xlu0 %61
    %63 = vmax.xlane.f32.xlu0 %v58
    %v64 = vpop.xlane.xlu0 %63
    %v65 = vsub.f32 %v57, %v62
    %v66 = vsub.f32 %v58, %v64
    %v67 = vmul.f32 %v65, 1.442695
    %v68 = vpow.pop %v67
    %v69 = vmul.f32 %v66, 1.442695
    %v70 = vpow.pop %v69
    %71 = vadd.xlane.f32.xlu0 %v68
    %v72 = vpop.xlane.xlu0 %71
    %73 = vadd.xlane.f32.xlu0 %v70
    %v74 = vpop.xlane.xlu0 %73
    %v75 = vlog2.pop %v72
    %v76 = vmul.f32 %v75, 0.6931472
    %v77 = vlog2.pop %v74
    %v78 = vmul.f32 %v77, 0.6931472
    %v79 = vadd.f32 %v76, %v62
    %v80 = vadd.f32 %v78, %v64
    %v81 = vsub.f32 %v57, %v79
    %v82 = vsub.f32 %v58, %v80
    %s83 = sadd.s32 0, 0
    %v84 = vlaneseq
    %v85 = vshrl.u32 %v84, 7
    %v86 = vadd.s32 %v85, 8
    %s87 = smul.u32 %s83, 16
    %v88 = vstv %s87
    %v89 = vadd.s32 %v88, %v85
    %v90 = vadd.s32 %v88, %v86
    %vm91 = vcmp.lt.s32.totalorder %v89, 16
    %vm92 = vcmp.lt.s32.totalorder %v90, 16
    %vm93 = vcmp.gt.f32.partialorder %v59, 0.0
    %vm94 = vcmp.gt.f32.partialorder %v60, 0.0
    %vm95 = vmand %vm91, %vm93
    %vm96 = vmand %vm92, %vm94
    %v97 = vsel %vm95, %v59, 1.0
    %v98 = vsel %vm96, %v60, 1.0
    %v99 = vlog2.pop %v97
    %v100 = vmul.f32 %v99, 0.6931472
    %v101 = vlog2.pop %v98
    %v102 = vmul.f32 %v101, 0.6931472
    %v103 = vsub.f32 %v100, %v81
    %v104 = vsub.f32 %v102, %v82
    %v105 = vmul.f32 %v59, %v103
    %v106 = vmul.f32 %v60, %v104
    %v107 = vsel %vm95, %v105, 0.0
    %v108 = vsel %vm96, %v106, 0.0
    %v109 = vadd.f32 %v107, 0.0
    %v110 = vadd.f32 %v108, 0.0
    %v111 = vld [vmem:[#allocation7] sm:$0xff]
    %v112 = vadd.f32 %v109, %v110
    %v113 = vadd.f32 %v111, %v112
    %114 = vst [vmem:[#allocation7] sm:$0xff] %v113
    // Predicated region
    $region22: #{tpu_custom_call.1} parent=1 // pred_check
      _
    $region23: #{tpu_custom_call.1} parent=1 // pred_check_branch
      %116 = sbr.rel (0) target = $region25
    $region24: #{tpu_custom_call.1} parent=1 // pred_region
      %s118 = ssub.s32 128, 128
      %119 = vsyncadd [#allocation4], %s118
      %s121 = sshll.u32 [#allocation7], 4
      %s122 = int_to_ptr.vmem [resolvable:$true] %s121
      %124 = dma.vmem_to_hbm [thread:$0]  %s122, 128, %s2, [#allocation4]
    $region25: #{tpu_custom_call.1} parent=1 // pred_fallthru
      _
    // Predicated region
    $region26: #{tpu_custom_call.1} parent=1 // pred_check
      _
    $region27: #{tpu_custom_call.1} parent=1 // pred_check_branch
      %126 = sbr.rel (0) target = $region29
    $region28: #{tpu_custom_call.1} parent=1 // pred_region
      %127 = dma.done [#allocation4], 128
    $region29: #{tpu_custom_call.1} parent=1 // pred_fallthru
      _
    %128 = vsyncpa [#allocation3], 1
    %129 = vsyncpa [#allocation6], 1
    %130 = vsyncpa [#allocation4], 1

</llo_original>
